<compile_context>
chip_gen: v7x
topology: tpu7x:2x2x1
jax: 0.10.0
libtpu: 0.0.40
codegen_flags: <defaults>
</compile_context>

<pallas_src>
import functools
import math

import jax
import jax.numpy as jnp
from jax.experimental import pallas as pl
from jax.experimental.pallas import tpu as pltpu


# ----------------------------------------------------------------------------
# Kernels
# ----------------------------------------------------------------------------
def _dice_sums_dense_kernel(p_ref, t_ref, num_ref, den_ref, *,
                            n_inner, tile_s, true_s, need_mask):
    """Dense (one-hot / soft) target path.

    p_ref, t_ref     : (N, C, tile_s) blocks (logits / target, caller dtype)
    num_ref, den_ref : (1, N, C) per-outer-chunk accumulators (f32)
    """
    po = pl.program_id(0)   # parallel outer chunk (keeps v7x's 2nd TC busy)
    si = pl.program_id(1)   # sequential spatial tile within the chunk

    @pl.when(si == 0)
    def _():
        num_ref[...] = jnp.zeros_like(num_ref)
        den_ref[...] = jnp.zeros_like(den_ref)

    logits = p_ref[...].astype(jnp.float32)            # (N, C, tile_s)
    m = jnp.max(logits, axis=1, keepdims=True)         # softmax over channels
    e = jnp.exp(logits - m)
    sm = e * pl.reciprocal(jnp.sum(e, axis=1, keepdims=True), approx=True)

    t = t_ref[...].astype(jnp.float32)

    if need_mask:
        # Spatial columns beyond the true extent (ragged tail / surplus blocks)
        # hold unspecified data; zero them before accumulating.
        col0 = (po * n_inner + si) * tile_s
        col = col0 + jax.lax.broadcasted_iota(jnp.int32, (1, 1, tile_s), 2)
        valid = col < true_s
        sm = jnp.where(valid, sm, 0.0)
        t = jnp.where(valid, t, 0.0)

    num_ref[...] += jnp.sum(sm * t, axis=-1)[None]                       # (1,N,C)
    # Split reductions: avoids materializing sm*sm + t*t as one full tile temp.
    den_ref[...] += (jnp.sum(sm * sm, axis=-1) + jnp.sum(t * t, axis=-1))[None]


def _dice_sums_label_kernel(p_ref, l_ref, num_ref, den_ref, *,
                            n_inner, tile_s, true_s, need_mask, num_classes):
    """Integer class-label fast path (one-hot built in-kernel).

    p_ref : (N, C, tile_s) logits block
    l_ref : (N, 1, tile_s) integer class labels block
    """
    po = pl.program_id(0)
    si = pl.program_id(1)

    @pl.when(si == 0)
    def _():
        num_ref[...] = jnp.zeros_like(num_ref)
        den_ref[...] = jnp.zeros_like(den_ref)

    logits = p_ref[...].astype(jnp.float32)
    m = jnp.max(logits, axis=1, keepdims=True)
    e = jnp.exp(logits - m)
    sm = e * pl.reciprocal(jnp.sum(e, axis=1, keepdims=True), approx=True)

    labels = l_ref[...].astype(jnp.int32)                       # (N, 1, tile_s)
    cls = jax.lax.broadcasted_iota(jnp.int32, (1, num_classes, tile_s), 1)
    onehot = labels == cls                                      # (N, C, tile_s)

    if need_mask:
        col0 = (po * n_inner + si) * tile_s
        col = col0 + jax.lax.broadcasted_iota(jnp.int32, (1, 1, tile_s), 2)
        valid = col < true_s
        onehot = jnp.logical_and(onehot, valid)
        sm = jnp.where(valid, sm, 0.0)

    t = onehot.astype(jnp.float32)
    num_ref[...] += jnp.sum(sm * t, axis=-1)[None]
    # one-hot target => t*t == t, so the target term of den is just sum(t).
    den_ref[...] += (jnp.sum(sm * sm, axis=-1) + jnp.sum(t, axis=-1))[None]


# ----------------------------------------------------------------------------
# Planning helpers
# ----------------------------------------------------------------------------
def _tpu_vmem_capacity_bytes():
    try:
        return int(pltpu.get_tpu_info().vmem_capacity_bytes)
    except Exception:
        return 64 * 1024 * 1024   # conservative: v7x per-TensorCore figure


def _vmem_plan():
    """(input_budget_bytes, vmem_limit_bytes, default_n_outer) per generation."""
    cap = _tpu_vmem_capacity_bytes()
    if cap >= 100 * 1024 * 1024:
        # v5e / v6e: 128 MiB VMEM, one TensorCore per chip.
        return 32 * 1024 * 1024, 96 * 1024 * 1024, 1
    # v7x: 64 MiB per TensorCore, two TensorCores per chip.
    return 16 * 1024 * 1024, 48 * 1024 * 1024, 2


def _sublane_multiple(itemsize):
    return 8 * max(1, 4 // itemsize)


def _choose_tile_s(S, N, streams, *, max_tile_s, vmem_budget_bytes):
    """Largest tile_s (multiple of 128, <= max_tile_s) whose double-buffered
    input blocks fit the budget.  `streams` = [(channels, itemsize), ...];
    accounts for sublane padding of the small channel axis."""
    def pipelined_bytes(ts):
        total = 0
        for c, isz in streams:
            mult = _sublane_multiple(isz)
            c_pad = ((c + mult - 1) // mult) * mult
            total += N * c_pad * ts * isz
        return 2 * total          # x2 pipeline buffers per input

    best = 128
    ts = 128
    while ts <= max_tile_s:
        if pipelined_bytes(ts) <= vmem_budget_bytes:
            best = ts
        ts *= 2
    s_rounded = ((S + 127) // 128) * 128
    return min(best, max(128, s_rounded))


# ----------------------------------------------------------------------------
# Public wrapper (matches DiceLoss().forward semantics)
# ----------------------------------------------------------------------------
def dice_loss_pallas(predict, target, smooth=1.0, p=2, reduction="mean",
                     weight=None, ignore_index=None, *,
                     max_tile_s=32 * 1024, n_outer=None):
    """Equivalent of DiceLoss().forward(predict, target), predict NCHW-like.

    target may be either
      * the same shape as predict (one-hot / soft target, any numeric dtype), or
      * integer class labels of shape (N, *spatial)   -- label fast path.
    """
    assert p == 2, "kernel implements the module default p=2"
    N, C = predict.shape[0], predict.shape[1]
    S = int(math.prod(predict.shape[2:])) if len(predict.shape) > 2 else 1

    label_path = (tuple(target.shape) == tuple(predict.shape[:1] + predict.shape[2:])
                  and jnp.issubdtype(target.dtype, jnp.integer))
    if not label_path:
        assert predict.shape == target.shape, "predict & target shape do not match"

    budget, vmem_limit, default_outer = _vmem_plan()

    # No dtype casts here: stream in the caller's dtype, upcast in-kernel.
    p3 = predict.reshape(N, C, S)
    if label_path:
        t3 = target.reshape(N, 1, S)
        t_channels = 1
    else:
        t3 = target.reshape(N, C, S)
        t_channels = C

    tile_s = _choose_tile_s(
        S, N,
        streams=[(C, jnp.dtype(predict.dtype).itemsize),
                 (t_channels, jnp.dtype(target.dtype).itemsize)],
        max_tile_s=max_tile_s, vmem_budget_bytes=budget)

    n_tiles = pl.cdiv(S, tile_s)
    if n_outer is None:
        n_outer = default_outer
    n_outer = max(1, min(int(n_outer), n_tiles))
    n_inner = pl.cdiv(n_tiles, n_outer)
    need_mask = (n_outer * n_inner * tile_s != S)

    # Clamp fully-surplus block indices (only possible when the 2-chunk split
    # over-covers n_tiles) to the last real tile; their logical-column mask is
    # all-false so they contribute zero.
    last_block = n_tiles - 1
    if n_outer * n_inner > n_tiles:
        def s_block(po, si):
            return jnp.minimum(po * n_inner + si, last_block)
    else:
        def s_block(po, si):
            return po * n_inner + si

    if label_path:
        kern = functools.partial(_dice_sums_label_kernel, n_inner=n_inner,
                                 tile_s=tile_s, true_s=S, need_mask=need_mask,
                                 num_classes=C)
        t_spec = pl.BlockSpec((N, 1, tile_s),
                              lambda po, si: (0, 0, s_block(po, si)))
    else:
        kern = functools.partial(_dice_sums_dense_kernel, n_inner=n_inner,
                                 tile_s=tile_s, true_s=S, need_mask=need_mask)
        t_spec = pl.BlockSpec((N, C, tile_s),
                              lambda po, si: (0, 0, s_block(po, si)))

    num_p, den_p = pl.pallas_call(
        kern,
        out_shape=(
            jax.ShapeDtypeStruct((n_outer, N, C), jnp.float32),
            jax.ShapeDtypeStruct((n_outer, N, C), jnp.float32),
        ),
        grid_spec=pltpu.PrefetchScalarGridSpec(
            num_scalar_prefetch=0,
            grid=(n_outer, n_inner),
            in_specs=[
                pl.BlockSpec((N, C, tile_s),
                             lambda po, si: (0, 0, s_block(po, si))),
                t_spec,
            ],
            out_specs=[
                pl.BlockSpec((1, N, C), lambda po, si: (po, 0, 0)),
                pl.BlockSpec((1, N, C), lambda po, si: (po, 0, 0)),
            ],
        ),
        compiler_params=pltpu.CompilerParams(
            dimension_semantics=("parallel", "arbitrary"),
            vmem_limit_bytes=int(vmem_limit)),
    )(p3, t3)

    num = num_p.sum(axis=0) + smooth        # (N, C)
    den = den_p.sum(axis=0) + smooth        # (N, C)
    loss_nc = 1.0 - num / den               # (N, C)

    # Per-class BinaryDiceLoss reduction + class averaging (tiny JAX glue).
    if reduction == "mean":
        per_class = loss_nc.mean(axis=0)    # (C,)
    elif reduction == "sum":
        per_class = loss_nc.sum(axis=0)     # (C,)
    elif reduction == "none":
        per_class = loss_nc.T               # (C, N)
    else:
        raise Exception("Unexpected reduction {}".format(reduction))

    total = jnp.zeros_like(per_class[0])
    for i in range(C):
        if i != ignore_index:
            dl = per_class[i]
            if weight is not None:
                dl = dl * weight[i]
            total = total + dl
    return total / C                        # module divides by C always


# ----------------------------------------------------------------------------
# Pure-JAX reference mirroring the PyTorch module
# ----------------------------------------------------------------------------
def _dice_loss_ref(predict, target, smooth=1.0):
    N, C = predict.shape[0], predict.shape[1]
    sm = jax.nn.softmax(predict.astype(jnp.float32), axis=1)
    total = 0.0
    for i in range(C):
        p_i = sm[:, i].reshape(N, -1)
        t_i = target[:, i].reshape(N, -1).astype(jnp.float32)
        num = jnp.sum(p_i * t_i, axis=1) + smooth
        den = jnp.sum(p_i ** 2 + t_i ** 2, axis=1) + smooth
        total = total + jnp.mean(1.0 - num / den)
    return total / C


if __name__ == "__main__":
    key = jax.random.PRNGKey(0)
    k1, k2, k3, k4 = jax.random.split(key, 4)

    # Test 1: basic small shape (single tile, exact coverage, no masking).
    N, C, H, W = 2, 4, 16, 16
    predict = jax.random.normal(k1, (N, C, H, W), dtype=jnp.float32)
    labels = jax.random.randint(k2, (N, H, W), 0, C)
    target = jax.nn.one_hot(labels, C, dtype=jnp.float32).transpose(0, 3, 1, 2)
    out = jax.block_until_ready(dice_loss_pallas(predict, target))
    ref = _dice_loss_ref(predict, target)
    # Tolerance accounts for pl.reciprocal(approx=True) in the softmax.
    assert jnp.allclose(out, ref, atol=1e-3, rtol=1e-3), (out, ref)

    # Test 2: ragged spatial extent + forced small tiles + forced 2-chunk
    # parallel split -> exercises the no-pad tail mask and the clamped
    # fully-surplus block on the second chunk.
    N, C, H, W = 2, 4, 24, 24
    predict = jax.random.normal(k3, (N, C, H, W), dtype=jnp.float32)
    labels = jax.random.randint(k4, (N, H, W), 0, C)
    target = jax.nn.one_hot(labels, C, dtype=jnp.float32).transpose(0, 3, 1, 2)
    out = jax.block_until_ready(
        dice_loss_pallas(predict, target, max_tile_s=128, n_outer=2))
    ref = _dice_loss_ref(predict, target)
    assert jnp.allclose(out, ref, atol=1e-3, rtol=1e-3), (out, ref)

    # Test 3: integer-label fast path (one-hot built in-kernel), same data.
    out_lbl = jax.block_until_ready(
        dice_loss_pallas(predict, labels.astype(jnp.int32),
                         max_tile_s=128, n_outer=2))
    assert jnp.allclose(out_lbl, ref, atol=1e-3, rtol=1e-3), (out_lbl, ref)

    print("KERNEL_OK")
</pallas_src>

<mosaic_0001>
module attributes {stable_mosaic.version = 11 : i64} {
  func.func @_dice_sums_dense_kernel(%arg0: i32, %arg1: i32, %arg2: memref<2x4x256xf32, #tpu.memory_space<vmem>>, %arg3: memref<2x4x256xf32, #tpu.memory_space<vmem>>, %arg4: memref<1x2x4xf32, #tpu.memory_space<vmem>>, %arg5: memref<1x2x4xf32, #tpu.memory_space<vmem>>) attributes {dimension_semantics = [#tpu.dimension_semantics<parallel>, #tpu.dimension_semantics<arbitrary>], iteration_bounds = array<i64: 1, 1>, scalar_prefetch = 0 : i64, scratch_operands = 0 : i64, tpu.core_type = #tpu.core_type<tc>, window_params = [{transform_indices = @transform_0, window_bounds = array<i64: 2, 4, 256>}, {transform_indices = @transform_1, window_bounds = array<i64: 2, 4, 256>}, {transform_indices = @transform_2, window_bounds = array<i64: 1, 2, 4>}, {transform_indices = @transform_3, window_bounds = array<i64: 1, 2, 4>}]} {
    %c0_i32 = arith.constant 0 : i32
    %0 = arith.cmpi eq, %arg1, %c0_i32 : i32
    %1 = arith.extui %0 : i1 to i32
    %c0_i32_0 = arith.constant 0 : i32
    %2 = arith.cmpi ne, %1, %c0_i32_0 : i32
    scf.if %2 {
      %cst_22 = arith.constant 0.000000e+00 : f32
      %30 = vector.broadcast %cst_22 : f32 to vector<1x2x4xf32>
      %c0_23 = arith.constant 0 : index
      %c0_24 = arith.constant 0 : index
      %c0_25 = arith.constant 0 : index
      %31 = vector.load %arg4[%c0_23, %c0_24, %c0_25] : memref<1x2x4xf32, #tpu.memory_space<vmem>>, vector<1x2x4xf32>
      tpu.vector_store %arg4[%c0_23, %c0_24, %c0_25], %30 {strides = array<i32>} : memref<1x2x4xf32, #tpu.memory_space<vmem>>, vector<1x2x4xf32>,
      %cst_26 = arith.constant 0.000000e+00 : f32
      %32 = vector.broadcast %cst_26 : f32 to vector<1x2x4xf32>
      %c0_27 = arith.constant 0 : index
      %c0_28 = arith.constant 0 : index
      %c0_29 = arith.constant 0 : index
      %33 = vector.load %arg5[%c0_27, %c0_28, %c0_29] : memref<1x2x4xf32, #tpu.memory_space<vmem>>, vector<1x2x4xf32>
      tpu.vector_store %arg5[%c0_27, %c0_28, %c0_29], %32 {strides = array<i32>} : memref<1x2x4xf32, #tpu.memory_space<vmem>>, vector<1x2x4xf32>,
    } else {
    }
    %c0 = arith.constant 0 : index
    %c0_1 = arith.constant 0 : index
    %c0_2 = arith.constant 0 : index
    %3 = vector.load %arg2[%c0, %c0_1, %c0_2] : memref<2x4x256xf32, #tpu.memory_space<vmem>>, vector<2x4x256xf32>
    %cst = arith.constant dense<0xFF800000> : vector<2x256xf32>
    %4 = vector.multi_reduction <maximumf>, %3, %cst [1] : vector<2x4x256xf32> to vector<2x256xf32>
    %5 = vector.shape_cast %4 : vector<2x256xf32> to vector<2x1x256xf32>
    %6 = vector.broadcast %5 : vector<2x1x256xf32> to vector<2x4x256xf32>
    %7 = arith.subf %3, %6 : vector<2x4x256xf32>
    %8 = math.exp %7 : vector<2x4x256xf32>
    %cst_3 = arith.constant dense<0.000000e+00> : vector<2x256xf32>
    %9 = vector.multi_reduction <add>, %8, %cst_3 [1] : vector<2x4x256xf32> to vector<2x256xf32>
    %10 = vector.shape_cast %9 : vector<2x256xf32> to vector<2x1x256xf32>
    %11 = tpu.reciprocal %10 {approx = true} : vector<2x1x256xf32> -> vector<2x1x256xf32>
    %12 = vector.broadcast %11 : vector<2x1x256xf32> to vector<2x4x256xf32>
    %13 = arith.mulf %8, %12 : vector<2x4x256xf32>
    %c0_4 = arith.constant 0 : index
    %c0_5 = arith.constant 0 : index
    %c0_6 = arith.constant 0 : index
    %14 = vector.load %arg3[%c0_4, %c0_5, %c0_6] : memref<2x4x256xf32, #tpu.memory_space<vmem>>, vector<2x4x256xf32>
    %c0_7 = arith.constant 0 : index
    %c0_8 = arith.constant 0 : index
    %c0_9 = arith.constant 0 : index
    %15 = vector.load %arg4[%c0_7, %c0_8, %c0_9] : memref<1x2x4xf32, #tpu.memory_space<vmem>>, vector<1x2x4xf32>
    %16 = arith.mulf %13, %14 : vector<2x4x256xf32>
    %cst_10 = arith.constant dense<0.000000e+00> : vector<2x4xf32>
    %17 = vector.multi_reduction <add>, %16, %cst_10 [2] : vector<2x4x256xf32> to vector<2x4xf32>
    %18 = vector.shape_cast %17 : vector<2x4xf32> to vector<1x2x4xf32>
    %19 = arith.addf %15, %18 : vector<1x2x4xf32>
    %c0_11 = arith.constant 0 : index
    %c0_12 = arith.constant 0 : index
    %c0_13 = arith.constant 0 : index
    %20 = vector.load %arg4[%c0_11, %c0_12, %c0_13] : memref<1x2x4xf32, #tpu.memory_space<vmem>>, vector<1x2x4xf32>
    tpu.vector_store %arg4[%c0_11, %c0_12, %c0_13], %19 {strides = array<i32>} : memref<1x2x4xf32, #tpu.memory_space<vmem>>, vector<1x2x4xf32>,
    %c0_14 = arith.constant 0 : index
    %c0_15 = arith.constant 0 : index
    %c0_16 = arith.constant 0 : index
    %21 = vector.load %arg5[%c0_14, %c0_15, %c0_16] : memref<1x2x4xf32, #tpu.memory_space<vmem>>, vector<1x2x4xf32>
    %22 = arith.mulf %13, %13 : vector<2x4x256xf32>
    %cst_17 = arith.constant dense<0.000000e+00> : vector<2x4xf32>
    %23 = vector.multi_reduction <add>, %22, %cst_17 [2] : vector<2x4x256xf32> to vector<2x4xf32>
    %24 = arith.mulf %14, %14 : vector<2x4x256xf32>
    %cst_18 = arith.constant dense<0.000000e+00> : vector<2x4xf32>
    %25 = vector.multi_reduction <add>, %24, %cst_18 [2] : vector<2x4x256xf32> to vector<2x4xf32>
    %26 = arith.addf %23, %25 : vector<2x4xf32>
    %27 = vector.shape_cast %26 : vector<2x4xf32> to vector<1x2x4xf32>
    %28 = arith.addf %21, %27 : vector<1x2x4xf32>
    %c0_19 = arith.constant 0 : index
    %c0_20 = arith.constant 0 : index
    %c0_21 = arith.constant 0 : index
    %29 = vector.load %arg5[%c0_19, %c0_20, %c0_21] : memref<1x2x4xf32, #tpu.memory_space<vmem>>, vector<1x2x4xf32>
    tpu.vector_store %arg5[%c0_19, %c0_20, %c0_21], %28 {strides = array<i32>} : memref<1x2x4xf32, #tpu.memory_space<vmem>>, vector<1x2x4xf32>,
    return
  }
  func.func @transform_0(%arg0: i32, %arg1: i32) -> (i32, i32, i32) {
    %c1_i32 = arith.constant 1 : i32
    %0 = arith.muli %arg0, %c1_i32 : i32
    %1 = arith.addi %0, %arg1 : i32
    %c0_i32 = arith.constant 0 : i32
    %c0_i32_0 = arith.constant 0 : i32
    %c0_i32_1 = arith.constant 0 : i32
    return %c0_i32, %c0_i32_0, %1 : i32, i32, i32
  }
  func.func @transform_1(%arg0: i32, %arg1: i32) -> (i32, i32, i32) {
    %c1_i32 = arith.constant 1 : i32
    %0 = arith.muli %arg0, %c1_i32 : i32
    %1 = arith.addi %0, %arg1 : i32
    %c0_i32 = arith.constant 0 : i32
    %c0_i32_0 = arith.constant 0 : i32
    %c0_i32_1 = arith.constant 0 : i32
    return %c0_i32, %c0_i32_0, %1 : i32, i32, i32
  }
  func.func @transform_2(%arg0: i32, %arg1: i32) -> (i32, i32, i32) {
    %c0_i32 = arith.constant 0 : i32
    %c0_i32_0 = arith.constant 0 : i32
    %c0_i32_1 = arith.constant 0 : i32
    return %arg0, %c0_i32, %c0_i32_0 : i32, i32, i32
  }
  func.func @transform_3(%arg0: i32, %arg1: i32) -> (i32, i32, i32) {
    %c0_i32 = arith.constant 0 : i32
    %c0_i32_0 = arith.constant 0 : i32
    %c0_i32_1 = arith.constant 0 : i32
    return %arg0, %c0_i32, %c0_i32_0 : i32, i32, i32
  }
}

</mosaic_0001>

<llo_original>
// kernel: tpu_custom_call.1
$region0: #{tpu_custom_call.1}
  #allocation0 [shape = 'u32[]', space=smem, size = 0x4, offset = 0x4, fixed_abs, tag = 'smem constant byte address 0x4 - core index']
  #allocation1 [shape = 'u32[144,128]{1,0:T(1,128)}', space=vmem, size = 0x12000, scoped, tag = 'internal scratch']
  %s0 = inlined_call_operand.hbm [shape: f32[2,4,256], index: 0, kind: input, shape index: {}]
  %s1 = inlined_call_operand.hbm [shape: f32[2,4,256], index: 1, kind: input, shape index: {}]
  %s2 = inlined_call_operand.hbm [shape: f32[1,2,4], index: 2, kind: output, shape index: {0}]
  %s3 = inlined_call_operand.hbm [shape: f32[1,2,4], index: 3, kind: output, shape index: {1}]
  %4 = xla_tuple %s2, %s3
  %s5 = sld [smem:[#allocation0]]
  $region38: #{tpu_custom_call.1} parent=0
    _
  %s7 = ssub.s32 1, %s5
  %s8 = scalar_select 0, %s7, %s5
  $region1: #{tpu_custom_call.1} parent=0
    #allocation2 [shape = 'u8[8192]{0}', space=vmem, size = 0x2000, scoped, tag = 'input window, operand 0, single buffered']
    #allocation3 [shape = 's32[1]{0}', space=sflag, size = 0x4, scoped, tag = 'scoped memory for tpu_custom_call.1']
    #allocation4 [shape = 's32[1]{0}', space=sflag, size = 0x4, scoped, tag = 'scoped memory for tpu_custom_call.1']
    #allocation5 [shape = 'u8[8192]{0}', space=vmem, size = 0x2000, scoped, tag = 'input window, operand 1, single buffered']
    #allocation6 [shape = 's32[1]{0}', space=sflag, size = 0x4, scoped, tag = 'scoped memory for tpu_custom_call.1']
    #allocation7 [shape = 'u8[1024]{0}', space=vmem, size = 0x400, scoped, tag = 'output window, operand 0, single buffered']
    #allocation8 [shape = 'u8[1024]{0}', space=vmem, size = 0x400, scoped, tag = 'output window, operand 1, single buffered']
    #allocation9 [shape = 's32[1]{0}', space=sflag, size = 0x4, scoped, tag = 'scoped memory for tpu_custom_call.1']
    %9 = vsyncpa [#allocation3], 0
    %10 = vsyncpa [#allocation6], 0
    %11 = vsyncpa [#allocation4], 0
    %12 = vsyncpa [#allocation9], 0
    // Predicated region
    $region2: #{tpu_custom_call.1} parent=1 // pred_check
      _
    $region3: #{tpu_custom_call.1} parent=1 // pred_check_branch
      %14 = sbr.rel (0) target = $region5
    $region4: #{tpu_custom_call.1} parent=1 // pred_region
      %s15 = sadd.s32 0, 0
      %s16 = smul.u32 2, %s15
      %s18 = ssub.s32 256, 256
      %19 = vsyncadd [#allocation3], %s18
      %s20 = smul.addr %s16, 64
      %s21 = scalar_lea.hbm %s0, %s20
      %s22 = sshll.u32 [#allocation2], 4
      %s23 = int_to_ptr.vmem [resolvable:$true] %s22
      %28 = dma.hbm_to_vmem [thread:$0]  %s21, 256, %s23, [#allocation3], 128, 128, 8
    $region5: #{tpu_custom_call.1} parent=1 // pred_fallthru
      _
    // Predicated region
    $region6: #{tpu_custom_call.1} parent=1 // pred_check
      _
    $region7: #{tpu_custom_call.1} parent=1 // pred_check_branch
      %30 = sbr.rel (0) target = $region9
    $region8: #{tpu_custom_call.1} parent=1 // pred_region
      %s31 = sadd.s32 0, 0
      %s32 = smul.u32 2, %s31
      %s34 = ssub.s32 256, 256
      %35 = vsyncadd [#allocation6], %s34
      %s36 = smul.addr %s32, 64
      %s37 = scalar_lea.hbm %s1, %s36
      %s38 = sshll.u32 [#allocation5], 4
      %s39 = int_to_ptr.vmem [resolvable:$true] %s38
      %44 = dma.hbm_to_vmem [thread:$0]  %s37, 256, %s39, [#allocation6], 128, 128, 8
    $region9: #{tpu_custom_call.1} parent=1 // pred_fallthru
      _
    // Predicated region
    $region10: #{tpu_custom_call.1} parent=1 // pred_check
      _
    $region11: #{tpu_custom_call.1} parent=1 // pred_check_branch
      %46 = sbr.rel (0) target = $region13
    $region12: #{tpu_custom_call.1} parent=1 // pred_region
      %47 = dma.done [#allocation3], 256
    $region13: #{tpu_custom_call.1} parent=1 // pred_fallthru
      _
    // Predicated region
    $region14: #{tpu_custom_call.1} parent=1 // pred_check
      _
    $region15: #{tpu_custom_call.1} parent=1 // pred_check_branch
      %49 = sbr.rel (0) target = $region17
    $region16: #{tpu_custom_call.1} parent=1 // pred_region
      %50 = dma.done [#allocation6], 256
    $region17: #{tpu_custom_call.1} parent=1 // pred_fallthru
      _
    %s51 = sadd.s32 0, 0
    %s52 = smul.u32 2, %s51
    %s53 = sadd.s32 0, 0
    %s54 = smul.u32 2, %s53
    %p55 = scmp.eq.s32.totalorder 0, 0
    // Predicated region
    $region18: #{tpu_custom_call.1} parent=1 // pred_check
      %p56 = pneg %p55
    $region19: #{tpu_custom_call.1} parent=1 // pred_check_branch
      %58 = sbr.rel (%p56) target = $region21
    $region20: #{tpu_custom_call.1} parent=1 // pred_region
      %vm59 = vcmask 25600
      %60 = vst.msk [vmem:[#allocation7] sm:$0x3] %vm59, 0.0
      %61 = vst.msk [vmem:[#allocation8] sm:$0x3] %vm59, 0.0
    $region21: #{tpu_custom_call.1} parent=1 // pred_fallthru
      _
    %v62 = vld [vmem:[#allocation2] sm:$0xff]
    %v63 = vld [vmem:[#allocation2 + $0x8] sm:$0xff]
    %v66 = vcombine.high %v62, %v62
    %v67 = vcombine.high %v63, %v63
    %vm70 = vcmask 1043456
    %v71 = vsel %vm70, %v62, -inf
    %v72 = vrot.slane %v71, 4
    %v73 = vmax.f32 %v71, %v72
    %v74 = vrot.slane %v73, 2
    %v75 = vmax.f32 %v73, %v74
    %v76 = vrot.slane %v75, 1
    %v77 = vmax.f32 %v75, %v76
    %v78 = vsel %vm70, %v66, -inf
    %v79 = vrot.slane %v78, 4
    %v80 = vmax.f32 %v78, %v79
    %v81 = vrot.slane %v80, 2
    %v82 = vmax.f32 %v80, %v81
    %v83 = vrot.slane %v82, 1
    %v84 = vmax.f32 %v82, %v83
    %v85 = vsel %vm70, %v63, -inf
    %v86 = vrot.slane %v85, 4
    %v87 = vmax.f32 %v85, %v86
    %v88 = vrot.slane %v87, 2
    %v89 = vmax.f32 %v87, %v88
    %v90 = vrot.slane %v89, 1
    %v91 = vmax.f32 %v89, %v90
    %v92 = vsel %vm70, %v67, -inf
    %v93 = vrot.slane %v92, 4
    %v94 = vmax.f32 %v92, %v93
    %v95 = vrot.slane %v94, 2
    %v96 = vmax.f32 %v94, %v95
    %v97 = vrot.slane %v96, 1
    %v98 = vmax.f32 %v96, %v97
    %v103 = vcombine.low %v77, %v84
    %v104 = vcombine.low %v91, %v98
    %v107 = vsub.f32 %v62, %v103
    %v108 = vsub.f32 %v63, %v104
    %v109 = vmul.f32 %v107, 1.442695
    %v110 = vpow.pop %v109
    %v111 = vmul.f32 %v108, 1.442695
    %v112 = vpow.pop %v111
    %v115 = vcombine.high %v110, %v110
    %v116 = vcombine.high %v112, %v112
    %v119 = vsel %vm70, %v110, 0.0
    %v120 = vrot.slane %v119, 4
    %v121 = vadd.f32 %v119, %v120
    %v122 = vrot.slane %v121, 2
    %v123 = vadd.f32 %v121, %v122
    %v124 = vrot.slane %v123, 1
    %v125 = vadd.f32 %v123, %v124
    %v126 = vsel %vm70, %v115, 0.0
    %v127 = vrot.slane %v126, 4
    %v128 = vadd.f32 %v126, %v127
    %v129 = vrot.slane %v128, 2
    %v130 = vadd.f32 %v128, %v129
    %v131 = vrot.slane %v130, 1
    %v132 = vadd.f32 %v130, %v131
    %v133 = vsel %vm70, %v112, 0.0
    %v134 = vrot.slane %v133, 4
    %v135 = vadd.f32 %v133, %v134
    %v136 = vrot.slane %v135, 2
    %v137 = vadd.f32 %v135, %v136
    %v138 = vrot.slane %v137, 1
    %v139 = vadd.f32 %v137, %v138
    %v140 = vsel %vm70, %v116, 0.0
    %v141 = vrot.slane %v140, 4
    %v142 = vadd.f32 %v140, %v141
    %v143 = vrot.slane %v142, 2
    %v144 = vadd.f32 %v142, %v143
    %v145 = vrot.slane %v144, 1
    %v146 = vadd.f32 %v144, %v145
    %v147 = vrcp.pop %v125
    %v148 = vrcp.pop %v132
    %v149 = vrcp.pop %v139
    %v150 = vrcp.pop %v146
    %v155 = vcombine.low %v147, %v148
    %v156 = vcombine.low %v149, %v150
    %v159 = vmul.f32 %v110, %v155
    %v160 = vmul.f32 %v112, %v156
    %v161 = vld [vmem:[#allocation5] sm:$0xff]
    %v162 = vld [vmem:[#allocation5 + $0x8] sm:$0xff]
    %v163 = vld [vmem:[#allocation7] sm:$0x3]
    %v164 = vmul.f32 %v159, %v161
    %v165 = vmul.f32 %v160, %v162
    %v168 = vcombine.high %v164, %v164
    %v169 = vcombine.high %v165, %v165
    %v172 = vsel %vm70, %v164, 0.0
    %v173 = vsel %vm70, %v168, 0.0
    %v174 = vadd.f32 %v172, %v173
    %175 = vadd.xlane.f32.xlu0 %v174
    %v176 = vpop.xlane.xlu0 %175
    %v177 = vsel %vm70, %v165, 0.0
    %v178 = vsel %vm70, %v169, 0.0
    %v179 = vadd.f32 %v177, %v178
    %180 = vadd.xlane.f32.xlu0 %v179
    %v181 = vpop.xlane.xlu0 %180
    %v184 = vlaneseq
    %v185 = vand.u32 %v184, 127
    %v186 = vlaneseq
    %v187 = vshrl.u32 %v186, 7
    %v188 = vsub.s32 %v185, %v187
    %v189 = vrot.slane %v176, %v188
    %v190 = vlaneseq
    %v191 = vshrl.u32 %v190, 7
    %v192 = vsub.s32 %v185, %v191
    %v193 = vrot.slane %v181, %v192
    %vm194 = vcmask 1041409
    %v195 = vsel %vm194, %v193, %v189
    %v197 = vadd.f32 %v163, %v195
    %vm198 = vcmask 25600
    %199 = vst.msk [vmem:[#allocation7] sm:$0x3] %vm198, %v197
    %v200 = vld [vmem:[#allocation8] sm:$0x3]
    %v201 = vmul.f32 %v159, %v159
    %v202 = vmul.f32 %v160, %v160
    %v205 = vcombine.high %v201, %v201
    %v206 = vcombine.high %v202, %v202
    %v209 = vsel %vm70, %v201, 0.0
    %v210 = vsel %vm70, %v205, 0.0
    %v211 = vadd.f32 %v209, %v210
    %212 = vadd.xlane.f32.xlu0 %v211
    %v213 = vpop.xlane.xlu0 %212
    %v214 = vsel %vm70, %v202, 0.0
    %v215 = vsel %vm70, %v206, 0.0
    %v216 = vadd.f32 %v214, %v215
    %217 = vadd.xlane.f32.xlu0 %v216
    %v218 = vpop.xlane.xlu0 %217
    %v219 = vmul.f32 %v161, %v161
    %v220 = vmul.f32 %v162, %v162
    %v223 = vcombine.high %v219, %v219
    %v224 = vcombine.high %v220, %v220
    %v227 = vsel %vm70, %v219, 0.0
    %v228 = vsel %vm70, %v223, 0.0
    %v229 = vadd.f32 %v227, %v228
    %230 = vadd.xlane.f32.xlu0 %v229
    %v231 = vpop.xlane.xlu0 %230
    %v232 = vsel %vm70, %v220, 0.0
    %v233 = vsel %vm70, %v224, 0.0
    %v234 = vadd.f32 %v232, %v233
    %235 = vadd.xlane.f32.xlu0 %v234
    %v236 = vpop.xlane.xlu0 %235
    %v237 = vadd.f32 %v213, %v231
    %v238 = vadd.f32 %v218, %v236
    %v241 = vlaneseq
    %v242 = vshrl.u32 %v241, 7
    %v243 = vsub.s32 %v185, %v242
    %v244 = vrot.slane %v237, %v243
    %v245 = vlaneseq
    %v246 = vshrl.u32 %v245, 7
    %v247 = vsub.s32 %v185, %v246
    %v248 = vrot.slane %v238, %v247
    %v249 = vsel %vm194, %v248, %v244
    %v251 = vadd.f32 %v200, %v249
    %252 = vst.msk [vmem:[#allocation8] sm:$0x3] %vm198, %v251
    // Predicated region
    $region22: #{tpu_custom_call.1} parent=1 // pred_check
      _
    $region23: #{tpu_custom_call.1} parent=1 // pred_check_branch
      %254 = sbr.rel (0) target = $region25
    $region24: #{tpu_custom_call.1} parent=1 // pred_region
      %s256 = ssub.s32 32, 32
      %257 = vsyncadd [#allocation4], %s256
      %s259 = sshll.u32 [#allocation7], 4
      %s260 = int_to_ptr.vmem [resolvable:$true] %s259
      %262 = dma.vmem_to_hbm [thread:$0]  %s260, 32, %s2, [#allocation4]
    $region25: #{tpu_custom_call.1} parent=1 // pred_fallthru
      _
    // Predicated region
    $region26: #{tpu_custom_call.1} parent=1 // pred_check
      _
    $region27: #{tpu_custom_call.1} parent=1 // pred_check_branch
      %264 = sbr.rel (0) target = $region29
    $region28: #{tpu_custom_call.1} parent=1 // pred_region
      %s266 = ssub.s32 32, 32
      %267 = vsyncadd [#allocation9], %s266
      %s269 = sshll.u32 [#allocation8], 4
      %s270 = int_to_ptr.vmem [resolvable:$true] %s269
      %272 = dma.vmem_to_hbm [thread:$0]  %s270, 32, %s3, [#allocation9]
    $region29: #{tpu_custom_call.1} parent=1 // pred_fallthru
      _
    // Predicated region
    $region30: #{tpu_custom_call.1} parent=1 // pred_check
      _
    $region31: #{tpu_custom_call.1} parent=1 // pred_check_branch
      %274 = sbr.rel (0) target = $region33
    $region32: #{tpu_custom_call.1} parent=1 // pred_region
      %275 = dma.done [#allocation4], 32
    $region33: #{tpu_custom_call.1} parent=1 // pred_fallthru
      _
    // Predicated region
    $region34: #{tpu_custom_call.1} parent=1 // pred_check
      _
    $region35: #{tpu_custom_call.1} parent=1 // pred_check_branch
      %277 = sbr.rel (0) target = $region37
    $region36: #{tpu_custom_call.1} parent=1 // pred_region
      %278 = dma.done [#allocation9], 32
    $region37: #{tpu_custom_call.1} parent=1 // pred_fallthru
      _
    %279 = vsyncpa [#allocation3], 1
    %280 = vsyncpa [#allocation6], 1
    %281 = vsyncpa [#allocation4], 1
    %282 = vsyncpa [#allocation9], 1

</llo_original>
